<compile_context>
chip_gen: v5e
topology: v5e:2x2
jax: 0.10.0
libtpu: 0.0.40
codegen_flags: <defaults>
</compile_context>

<pallas_src>
import functools

import jax
import jax.numpy as jnp
from jax.experimental import pallas as pl
from jax.experimental.pallas import tpu as pltpu


# int32 views of the usual murmur/golden-ratio mixing constants.
_C1 = -1640531527   # 0x9E3779B9
_C2 = -2048144789   # 0x85EBCA6B
_C3 = -1028477387   # 0xC2B2AE35


def _pos_enc_kernel(seed_ref, x_ref, pe_ref, o_ref, *, dropout_p, training, block_rows):
    # x_ref : (block_rows, C) tile of the 2-D view of x
    # pe_ref: (block_rows, C) or (1, C) positional-embedding tile (broadcasts over rows)
    # o_ref : (block_rows, C) output tile
    y = x_ref[...] + pe_ref[...]

    if training and dropout_p > 0.0:
        keep_prob = 1.0 - float(dropout_p)
        shape = y.shape
        # Global (row, col) coordinate of every element in this tile -> independent
        # dropout bits per tile without re-seeding hardware PRNG state.
        r = jax.lax.broadcasted_iota(jnp.int32, shape, 0) + pl.program_id(0) * block_rows
        c = jax.lax.broadcasted_iota(jnp.int32, shape, 1)
        # Counter-based hash -> uniform [0, 1).  int32 arithmetic is modular, so the
        # multiplies wrap exactly like the standard murmur-style finalizer.
        h = seed_ref[0] * jnp.int32(_C1) + r * jnp.int32(_C2) + c * jnp.int32(_C3)
        h = (h ^ (h >> 16)) * jnp.int32(_C2)
        h = (h ^ (h >> 13)) * jnp.int32(_C3)
        h = h ^ (h >> 16)
        bits24 = (h >> 5) & jnp.int32(0x00FFFFFF)            # 24 non-negative bits
        u = bits24.astype(jnp.float32) * jnp.float32(1.0 / (1 << 24))
        keep = u < jnp.float32(keep_prob)
        y = jnp.where(keep, y * jnp.float32(1.0 / keep_prob), jnp.zeros_like(y))

    o_ref[...] = y.astype(o_ref.dtype)


def positional_encoding(x, wpe, *, dropout_p=0.1, training=False, seed=0,
                        target_block_bytes=2 * 1024 * 1024):
    """dropout(x + wpe[arange(T)]).  x: (B, T, D); wpe: (max_len, D), max_len >= T."""
    B, T, D = x.shape
    max_len = wpe.shape[0]
    assert wpe.shape[1] == D and max_len >= T
    itemsize = jnp.dtype(x.dtype).itemsize
    seed_arr = jnp.asarray([seed], dtype=jnp.int32)

    lane_aligned = (D % 128 == 0) and (T % 8 == 0)

    if lane_aligned:
        # ---------- (B*T, D) row-tiled layout; wpe fed directly via BlockSpec ----------
        rows = B * T
        rows_budget = max(8, target_block_bytes // (D * itemsize))
        tr = 8
        for cand in range(T, 7, -1):            # largest divisor of T, multiple of 8
            if T % cand == 0 and cand % 8 == 0 and cand <= rows_budget:
                tr = cand
                break
        n_t = T // tr                           # pe blocks per sequence
        x2 = x.reshape(rows, D)
        pe_arg = wpe                            # no pre-slice; index_map does the lookup
        grid = (rows // tr,)
        in_specs = [
            pl.BlockSpec((tr, D), lambda i, s: (i, 0)),
            pl.BlockSpec((tr, D), lambda i, s, n=n_t: (i % n, 0)),
        ]
        out_specs = pl.BlockSpec((tr, D), lambda i, s: (i, 0))
        out_shape = jax.ShapeDtypeStruct((rows, D), x.dtype)
        block_rows = tr
    else:
        # ---------- small / unaligned D: fold (T, D) into the lane axis ----------
        C = T * D
        x2 = x.reshape(B, C)
        pe_arg = wpe[:T].reshape(1, C)          # tiny (T*D) helper, static slice
        rows_budget = max(1, target_block_bytes // (C * itemsize))
        rb = B
        if B > rows_budget:
            for cand in range(min(B, int(rows_budget)), 7, -1):
                if cand % 8 == 0 and B % cand == 0:
                    rb = cand
                    break
            # else: fall back to rb = B (single block); fine for realistic shapes.
        grid = (B // rb,)
        in_specs = [
            pl.BlockSpec((rb, C), lambda i, s: (i, 0)),
            pl.BlockSpec((1, C), lambda i, s: (0, 0)),
        ]
        out_specs = pl.BlockSpec((rb, C), lambda i, s: (i, 0))
        out_shape = jax.ShapeDtypeStruct((B, C), x.dtype)
        block_rows = rb

    kernel = functools.partial(
        _pos_enc_kernel,
        dropout_p=float(dropout_p),
        training=bool(training),
        block_rows=int(block_rows),
    )

    out2 = pl.pallas_call(
        kernel,
        out_shape=out_shape,
        grid_spec=pltpu.PrefetchScalarGridSpec(
            num_scalar_prefetch=1,
            grid=grid,
            in_specs=in_specs,
            out_specs=out_specs,
        ),
        compiler_params=pltpu.CompilerParams(
            dimension_semantics=("parallel",),
        ),
    )(seed_arr, x2, pe_arg)

    return out2.reshape(B, T, D)


if __name__ == "__main__":
    key = jax.random.PRNGKey(0)
    kx, kw, kx2, kw2 = jax.random.split(key, 4)
    MAX_LEN = 512

    # ---- Small-D path (module defaults: d_model=32) — lane-dense folded layout ----
    B, T, D = 2, 8, 32
    x = jax.random.normal(kx, (B, T, D), dtype=jnp.float32)
    wpe = jax.random.normal(kw, (MAX_LEN, D), dtype=jnp.float32)

    out = jax.block_until_ready(positional_encoding(x, wpe, dropout_p=0.1, training=False))
    ref = x + wpe[:T][None, :, :]
    assert jnp.allclose(out, ref, atol=1e-6), "eval-mode mismatch (small-D path)"

    # ---- Lane-aligned path (D % 128 == 0) — wpe read directly via BlockSpec ----
    B2, T2, D2 = 2, 16, 128
    x_l = jax.random.normal(kx2, (B2, T2, D2), dtype=jnp.float32)
    wpe_l = jax.random.normal(kw2, (MAX_LEN, D2), dtype=jnp.float32)
    out_l = jax.block_until_ready(
        positional_encoding(x_l, wpe_l, dropout_p=0.1, training=False))
    ref_l = x_l + wpe_l[:T2][None, :, :]
    assert jnp.allclose(out_l, ref_l, atol=1e-6), "eval-mode mismatch (lane-aligned path)"

    # ---- Training path: in-kernel inverted dropout (hash-based PRNG) ----
    def _check_dropout(out_tr, ref_arr, p):
        scaled = ref_arr * jnp.float32(1.0 / (1.0 - p))
        is_zero = jnp.abs(out_tr) < 1e-6
        is_kept = jnp.abs(out_tr - scaled) < 1e-5
        assert bool(jnp.all(is_zero | is_kept)), "dropout output not in {0, (x+pe)/keep}"
        frac = float(jnp.mean(is_kept.astype(jnp.float32)))
        assert 0.7 <= frac <= 0.99, f"dropout keep fraction implausible: {frac}"

    out_tr = jax.block_until_ready(
        positional_encoding(x, wpe, dropout_p=0.1, training=True, seed=123))
    _check_dropout(out_tr, ref, 0.1)

    out_tr_l = jax.block_until_ready(
        positional_encoding(x_l, wpe_l, dropout_p=0.1, training=True, seed=7))
    _check_dropout(out_tr_l, ref_l, 0.1)

    print("KERNEL_OK")
</pallas_src>

<mosaic_0001>
module attributes {stable_mosaic.version = 11 : i64} {
  func.func @_pos_enc_kernel(%arg0: i32, %arg1: memref<1xi32, #tpu.memory_space<smem>>, %arg2: memref<2x256xf32, #tpu.memory_space<vmem>>, %arg3: memref<1x256xf32, #tpu.memory_space<vmem>>, %arg4: memref<2x256xf32, #tpu.memory_space<vmem>>) attributes {dimension_semantics = [#tpu.dimension_semantics<parallel>], iteration_bounds = array<i64: 1>, scalar_prefetch = 1 : i64, scratch_operands = 0 : i64, tpu.core_type = #tpu.core_type<tc>, window_params = [{transform_indices = @transform_0, window_bounds = array<i64: 2, 256>}, {pipeline_mode = #tpu.pipeline_mode<synchronous>, transform_indices = @transform_1, window_bounds = array<i64: 1, 256>}, {transform_indices = @transform_2, window_bounds = array<i64: 2, 256>}]} {
    %c0 = arith.constant 0 : index
    %c0_0 = arith.constant 0 : index
    %0 = vector.load %arg2[%c0, %c0_0] : memref<2x256xf32, #tpu.memory_space<vmem>>, vector<2x256xf32>
    %c0_1 = arith.constant 0 : index
    %c0_2 = arith.constant 0 : index
    %1 = vector.load %arg3[%c0_1, %c0_2] : memref<1x256xf32, #tpu.memory_space<vmem>>, vector<1x256xf32>
    %2 = vector.broadcast %1 : vector<1x256xf32> to vector<2x256xf32>
    %3 = arith.addf %0, %2 : vector<2x256xf32>
    %c0_3 = arith.constant 0 : index
    %c0_4 = arith.constant 0 : index
    %4 = vector.load %arg4[%c0_3, %c0_4] : memref<2x256xf32, #tpu.memory_space<vmem>>, vector<2x256xf32>
    tpu.vector_store %arg4[%c0_3, %c0_4], %3 {strides = array<i32>} : memref<2x256xf32, #tpu.memory_space<vmem>>, vector<2x256xf32>,
    return
  }
  func.func @transform_0(%arg0: i32, %arg1: memref<1xi32, #tpu.memory_space<smem>>) -> (i32, i32) {
    %c0_i32 = arith.constant 0 : i32
    %c0_i32_0 = arith.constant 0 : i32
    return %arg0, %c0_i32 : i32, i32
  }
  func.func @transform_1(%arg0: i32, %arg1: memref<1xi32, #tpu.memory_space<smem>>) -> (i32, i32) {
    %c0_i32 = arith.constant 0 : i32
    %c0_i32_0 = arith.constant 0 : i32
    %c0_i32_1 = arith.constant 0 : i32
    return %c0_i32, %c0_i32_0 : i32, i32
  }
  func.func @transform_2(%arg0: i32, %arg1: memref<1xi32, #tpu.memory_space<smem>>) -> (i32, i32) {
    %c0_i32 = arith.constant 0 : i32
    %c0_i32_0 = arith.constant 0 : i32
    return %arg0, %c0_i32 : i32, i32
  }
}

</mosaic_0001>

<llo_original>
// kernel: tpu_custom_call.1
$region0: #{tpu_custom_call.1}
  #allocation0 [shape = 'u32[]', space=smem, size = 0x4, offset = 0x4, fixed_abs, tag = 'smem constant byte address 0x4 - core index']
  #allocation1 [shape = 'u32[72,128]{1,0:T(1,128)}', space=vmem, size = 0x9000, scoped, tag = 'internal scratch']
  #allocation2 [shape = 's32[1]{0}', space=sflag, size = 0x4, scoped, tag = 'scoped memory for tpu_custom_call.1']
  #allocation3 [shape = 's32[1]{0:T(128)S(6)}', space=smem, size = 0x200, scoped, tag = 'prefetched SMEM operand 0']
  %s0 = inlined_call_operand.<no memory space> [shape: s32[1], index: 0, kind: input, shape index: {}]
  %s1 = inlined_call_operand.hbm [shape: f32[2,256], index: 1, kind: input, shape index: {}]
  %s2 = inlined_call_operand.vmem [shape: f32[1,256], index: 2, kind: input, shape index: {}]
  %s3 = inlined_call_operand.hbm [shape: f32[2,256], index: 3, kind: output, shape index: {}]
  %s4 = sld [smem:[#allocation0]]
  $region22: #{tpu_custom_call.1} parent=0
    _
  %s6 = ssub.s32 1, %s4
  %s7 = scalar_select 0, %s6, %s4
  %8 = sst [smem:[#allocation3]] %s0
  $region1: #{tpu_custom_call.1} parent=0
    #allocation4 [shape = 'u8[2048]{0}', space=vmem, size = 0x800, scoped, tag = 'input window, operand 1, single buffered']
    #allocation5 [shape = 's32[1]{0}', space=sflag, size = 0x4, scoped, tag = 'scoped memory for tpu_custom_call.1']
    #allocation6 [shape = 's32[1]{0}', space=sflag, size = 0x4, scoped, tag = 'scoped memory for tpu_custom_call.1']
    #allocation7 [shape = 'u8[2048]{0}', space=vmem, size = 0x800, scoped, tag = 'output window, operand 0, single buffered']
    %9 = vsyncpa [#allocation5], 0
    %10 = vsyncpa [#allocation6], 0
    // Predicated region
    $region2: #{tpu_custom_call.1} parent=1 // pred_check
      _
    $region3: #{tpu_custom_call.1} parent=1 // pred_check_branch
      %12 = sbr.rel (0) target = $region5
    $region4: #{tpu_custom_call.1} parent=1 // pred_region
      %14 = vsyncadd [#allocation5], 0
      %s16 = sshll.u32 %s1, 4
      %s17 = int_to_ptr.hbm [resolvable:$true] %s16
      %s18 = sshll.u32 [#allocation4], 4
      %s19 = int_to_ptr.vmem [resolvable:$true] %s18
      %21 = dma.hbm_to_vmem [thread:$0]  %s17, 64, %s19, [#allocation5]
    $region5: #{tpu_custom_call.1} parent=1 // pred_fallthru
      _
    // Predicated region
    $region6: #{tpu_custom_call.1} parent=1 // pred_check
      _
    $region7: #{tpu_custom_call.1} parent=1 // pred_check_branch
      %23 = sbr.rel (0) target = $region9
    $region8: #{tpu_custom_call.1} parent=1 // pred_region
      _
    $region9: #{tpu_custom_call.1} parent=1 // pred_fallthru
      _
    // Predicated region
    $region10: #{tpu_custom_call.1} parent=1 // pred_check
      _
    $region11: #{tpu_custom_call.1} parent=1 // pred_check_branch
      %25 = sbr.rel (0) target = $region13
    $region12: #{tpu_custom_call.1} parent=1 // pred_region
      %27 = dma.done [#allocation5], 64
    $region13: #{tpu_custom_call.1} parent=1 // pred_fallthru
      _
    %v28 = vld [vmem:[#allocation4] sm:$0xf]
    %v29 = vld [vmem:[%s2] sm:$0x3]
    %v31 = vperm.slane %v29, 0
    %v32 = vperm.slane %v29, 1
    %v33 = vrot.slane %v32, 6
    %vm34 = vcmask 1041408
    %v35 = vsel %vm34, %v31, %v33
    %v37 = vadd.f32 %v28, %v35
    %38 = vst [vmem:[#allocation7] sm:$0xf] %v37
    // Predicated region
    $region14: #{tpu_custom_call.1} parent=1 // pred_check
      _
    $region15: #{tpu_custom_call.1} parent=1 // pred_check_branch
      %40 = sbr.rel (0) target = $region17
    $region16: #{tpu_custom_call.1} parent=1 // pred_region
      %42 = vsyncadd [#allocation6], 0
      %s44 = sshll.u32 [#allocation7], 4
      %s45 = int_to_ptr.vmem [resolvable:$true] %s44
      %s46 = sshll.u32 %s3, 4
      %s47 = int_to_ptr.hbm [resolvable:$true] %s46
      %49 = dma.vmem_to_hbm [thread:$0]  %s45, 64, %s47, [#allocation6]
    $region17: #{tpu_custom_call.1} parent=1 // pred_fallthru
      _
    // Predicated region
    $region18: #{tpu_custom_call.1} parent=1 // pred_check
      _
    $region19: #{tpu_custom_call.1} parent=1 // pred_check_branch
      %51 = sbr.rel (0) target = $region21
    $region20: #{tpu_custom_call.1} parent=1 // pred_region
      %53 = dma.done [#allocation6], 64
    $region21: #{tpu_custom_call.1} parent=1 // pred_fallthru
      _
    %54 = vsyncpa [#allocation5], 1
    %55 = vsyncpa [#allocation6], 1

</llo_original>
